<compile_context>
chip_gen: v5e
topology: v5e:2x2
jax: 0.10.0
libtpu: 0.0.40
codegen_flags: <defaults>
</compile_context>

<pallas_src>
import functools

import jax
import jax.numpy as jnp
from jax.experimental import pallas as pl
from jax.experimental.pallas import tpu as pltpu


def _groups_loss_kernel(x_ref, o_ref, m_sc, s_sc, sum_sc, *, inv_d):
    # Grid = (row_blocks, d_blocks).  x_ref: (TR, TK) tile; o_ref: (TR, 1) tile.
    k = pl.program_id(1)

    @pl.when(k == 0)
    def _init():
        m_sc[...] = jnp.full_like(m_sc, -jnp.inf)
        s_sc[...] = jnp.zeros_like(s_sc)
        sum_sc[...] = jnp.zeros_like(sum_sc)

    x = x_ref[...].astype(jnp.float32)  # (TR, TK)

    # Online (streaming) logsumexp over the lane axis.
    m_prev = m_sc[...]
    m_new = jnp.maximum(m_prev, jnp.max(x, axis=-1, keepdims=True))
    s_sc[...] = (jnp.exp(m_prev - m_new) * s_sc[...]
                 + jnp.sum(jnp.exp(x - m_new), axis=-1, keepdims=True))
    sum_sc[...] = sum_sc[...] + jnp.sum(x, axis=-1, keepdims=True)
    m_sc[...] = m_new

    @pl.when(k == pl.num_programs(1) - 1)
    def _finalize():
        lse = m_sc[...] + jnp.log(s_sc[...])        # (TR, 1)
        mean = sum_sc[...] * inv_d                  # sum * (1/D), no second pass
        o_ref[...] = (lse - mean).astype(o_ref.dtype)


def _round_up(x, m):
    return ((x + m - 1) // m) * m


def _round_down(x, m):
    return (x // m) * m


def _pick_lane_tile(d, max_lane_tile):
    """Largest D-tile that divides D exactly: full D, or a 128-multiple divisor."""
    if d <= max_lane_tile:
        return d
    cap = max(128, _round_down(max_lane_tile, 128))
    for tk in range(cap, 0, -128):
        if d % tk == 0:
            return tk
    return d  # no clean 128-multiple divisor; fall back to whole rows


def _pick_row_tile(r, tk, itemsize, target_block_bytes):
    """Budget-driven row tile: multiple of 8, >=2 blocks when R allows."""
    tr = max(8, _round_down(target_block_bytes // max(1, tk * itemsize), 8))
    tr = min(tr, _round_up(r, 8))
    # Guarantee >=2 row blocks (megacore sharding on v7x) whenever possible.
    if r > 8 and -(-r // tr) < 2:
        tr = max(8, _round_up(-(-r // 2), 8))
    return tr


def groups_loss(probs, *, target_block_bytes=2 * 1024 * 1024, max_lane_tile=2048):
    """-log(softmax(probs, axis=-1)).mean(axis=-1), computed in a Pallas kernel."""
    orig_shape = probs.shape
    D = orig_shape[-1]
    lead = orig_shape[:-1]
    R = 1
    for s in lead:
        R *= s

    x2d = probs.reshape(R, D)
    itemsize = jnp.dtype(probs.dtype).itemsize

    tk = _pick_lane_tile(D, max_lane_tile)
    tr = _pick_row_tile(R, tk, itemsize, target_block_bytes)
    nr = -(-R // tr)
    nk = D // tk
    R_pad = nr * tr

    if R_pad != R:
        # Zero-padded rows compute finite garbage and are sliced off below.
        x2d = jnp.pad(x2d, ((0, R_pad - R), (0, 0)))

    kernel = functools.partial(_groups_loss_kernel, inv_d=1.0 / D)

    out2d = pl.pallas_call(
        kernel,
        out_shape=jax.ShapeDtypeStruct((R_pad, 1), probs.dtype),
        grid_spec=pltpu.PrefetchScalarGridSpec(
            num_scalar_prefetch=0,
            grid=(nr, nk),
            in_specs=[pl.BlockSpec((tr, tk), lambda i, k: (i, k))],
            out_specs=pl.BlockSpec((tr, 1), lambda i, k: (i, 0)),
            scratch_shapes=[pltpu.VMEM((tr, 1), jnp.float32)] * 3,
        ),
        compiler_params=pltpu.CompilerParams(
            dimension_semantics=("parallel", "arbitrary"),
        ),
    )(x2d)

    return out2d[:R, 0].reshape(lead)


def groups_loss_ref(probs):
    # pure-JAX reference matching the PyTorch module
    logp = jax.nn.log_softmax(probs, axis=-1)
    return (-logp).mean(axis=-1)


if __name__ == "__main__":
    key = jax.random.PRNGKey(0)
    k0, k1 = jax.random.split(key)

    # small shape consistent with the forward: (batch=2, seq=8, hidden=128)
    probs = jax.random.normal(k0, (2, 8, 128), dtype=jnp.float32)
    out = jax.block_until_ready(groups_loss(probs))
    ref = groups_loss_ref(probs)
    assert out.shape == ref.shape == (2, 8)
    assert jnp.allclose(out, ref, atol=1e-5, rtol=1e-5)

    # exercise the D-tiled online-logsumexp path (nk > 1) with a small lane tile
    probs2 = jax.random.normal(k1, (4, 8, 256), dtype=jnp.float32)
    out2 = jax.block_until_ready(groups_loss(probs2, max_lane_tile=128))
    ref2 = groups_loss_ref(probs2)
    assert out2.shape == ref2.shape == (4, 8)
    assert jnp.allclose(out2, ref2, atol=1e-5, rtol=1e-5)

    print("KERNEL_OK")
</pallas_src>

<mosaic_0001>
module attributes {stable_mosaic.version = 11 : i64} {
  func.func @_groups_loss_kernel(%arg0: i32, %arg1: i32, %arg2: memref<8x128xf32, #tpu.memory_space<vmem>>, %arg3: memref<8x1xf32, #tpu.memory_space<vmem>>, %arg4: memref<8x1xf32, #tpu.memory_space<vmem>>, %arg5: memref<8x1xf32, #tpu.memory_space<vmem>>, %arg6: memref<8x1xf32, #tpu.memory_space<vmem>>) attributes {dimension_semantics = [#tpu.dimension_semantics<parallel>, #tpu.dimension_semantics<arbitrary>], iteration_bounds = array<i64: 2, 1>, scalar_prefetch = 0 : i64, scratch_operands = 3 : i64, tpu.core_type = #tpu.core_type<tc>, window_params = [{transform_indices = @transform_0, window_bounds = array<i64: 8, 128>}, {transform_indices = @transform_1, window_bounds = array<i64: 8, 1>}]} {
    %c0_i32 = arith.constant 0 : i32
    %0 = arith.cmpi eq, %arg1, %c0_i32 : i32
    %1 = arith.extui %0 : i1 to i32
    %c0_i32_0 = arith.constant 0 : i32
    %2 = arith.cmpi ne, %1, %c0_i32_0 : i32
    scf.if %2 {
      %cst_18 = arith.constant 0xFF800000 : f32
      %28 = vector.broadcast %cst_18 : f32 to vector<8x1xf32>
      %c0_19 = arith.constant 0 : index
      %c0_20 = arith.constant 0 : index
      %29 = vector.load %arg4[%c0_19, %c0_20] : memref<8x1xf32, #tpu.memory_space<vmem>>, vector<8x1xf32>
      tpu.vector_store %arg4[%c0_19, %c0_20], %28 {strides = array<i32>} : memref<8x1xf32, #tpu.memory_space<vmem>>, vector<8x1xf32>,
      %cst_21 = arith.constant 0.000000e+00 : f32
      %30 = vector.broadcast %cst_21 : f32 to vector<8x1xf32>
      %c0_22 = arith.constant 0 : index
      %c0_23 = arith.constant 0 : index
      %31 = vector.load %arg5[%c0_22, %c0_23] : memref<8x1xf32, #tpu.memory_space<vmem>>, vector<8x1xf32>
      tpu.vector_store %arg5[%c0_22, %c0_23], %30 {strides = array<i32>} : memref<8x1xf32, #tpu.memory_space<vmem>>, vector<8x1xf32>,
      %cst_24 = arith.constant 0.000000e+00 : f32
      %32 = vector.broadcast %cst_24 : f32 to vector<8x1xf32>
      %c0_25 = arith.constant 0 : index
      %c0_26 = arith.constant 0 : index
      %33 = vector.load %arg6[%c0_25, %c0_26] : memref<8x1xf32, #tpu.memory_space<vmem>>, vector<8x1xf32>
      tpu.vector_store %arg6[%c0_25, %c0_26], %32 {strides = array<i32>} : memref<8x1xf32, #tpu.memory_space<vmem>>, vector<8x1xf32>,
    } else {
    }
    %c0 = arith.constant 0 : index
    %c0_1 = arith.constant 0 : index
    %3 = vector.load %arg2[%c0, %c0_1] : memref<8x128xf32, #tpu.memory_space<vmem>>, vector<8x128xf32>
    %c0_2 = arith.constant 0 : index
    %c0_3 = arith.constant 0 : index
    %4 = vector.load %arg4[%c0_2, %c0_3] : memref<8x1xf32, #tpu.memory_space<vmem>>, vector<8x1xf32>
    %cst = arith.constant dense<0xFF800000> : vector<8xf32>
    %5 = vector.multi_reduction <maximumf>, %3, %cst [1] : vector<8x128xf32> to vector<8xf32>
    %6 = vector.shape_cast %5 : vector<8xf32> to vector<8x1xf32>
    %7 = arith.maximumf %4, %6 : vector<8x1xf32>
    %8 = arith.subf %4, %7 : vector<8x1xf32>
    %9 = math.exp %8 : vector<8x1xf32>
    %c0_4 = arith.constant 0 : index
    %c0_5 = arith.constant 0 : index
    %10 = vector.load %arg5[%c0_4, %c0_5] : memref<8x1xf32, #tpu.memory_space<vmem>>, vector<8x1xf32>
    %11 = arith.mulf %9, %10 : vector<8x1xf32>
    %12 = vector.broadcast %7 : vector<8x1xf32> to vector<8x128xf32>
    %13 = arith.subf %3, %12 : vector<8x128xf32>
    %14 = math.exp %13 : vector<8x128xf32>
    %cst_6 = arith.constant dense<0.000000e+00> : vector<8xf32>
    %15 = vector.multi_reduction <add>, %14, %cst_6 [1] : vector<8x128xf32> to vector<8xf32>
    %16 = vector.shape_cast %15 : vector<8xf32> to vector<8x1xf32>
    %17 = arith.addf %11, %16 : vector<8x1xf32>
    %c0_7 = arith.constant 0 : index
    %c0_8 = arith.constant 0 : index
    %18 = vector.load %arg5[%c0_7, %c0_8] : memref<8x1xf32, #tpu.memory_space<vmem>>, vector<8x1xf32>
    tpu.vector_store %arg5[%c0_7, %c0_8], %17 {strides = array<i32>} : memref<8x1xf32, #tpu.memory_space<vmem>>, vector<8x1xf32>,
    %c0_9 = arith.constant 0 : index
    %c0_10 = arith.constant 0 : index
    %19 = vector.load %arg6[%c0_9, %c0_10] : memref<8x1xf32, #tpu.memory_space<vmem>>, vector<8x1xf32>
    %cst_11 = arith.constant dense<0.000000e+00> : vector<8xf32>
    %20 = vector.multi_reduction <add>, %3, %cst_11 [1] : vector<8x128xf32> to vector<8xf32>
    %21 = vector.shape_cast %20 : vector<8xf32> to vector<8x1xf32>
    %22 = arith.addf %19, %21 : vector<8x1xf32>
    %c0_12 = arith.constant 0 : index
    %c0_13 = arith.constant 0 : index
    %23 = vector.load %arg6[%c0_12, %c0_13] : memref<8x1xf32, #tpu.memory_space<vmem>>, vector<8x1xf32>
    tpu.vector_store %arg6[%c0_12, %c0_13], %22 {strides = array<i32>} : memref<8x1xf32, #tpu.memory_space<vmem>>, vector<8x1xf32>,
    %c0_14 = arith.constant 0 : index
    %c0_15 = arith.constant 0 : index
    %24 = vector.load %arg4[%c0_14, %c0_15] : memref<8x1xf32, #tpu.memory_space<vmem>>, vector<8x1xf32>
    tpu.vector_store %arg4[%c0_14, %c0_15], %7 {strides = array<i32>} : memref<8x1xf32, #tpu.memory_space<vmem>>, vector<8x1xf32>,
    %c0_i32_16 = arith.constant 0 : i32
    %25 = arith.cmpi eq, %arg1, %c0_i32_16 : i32
    %26 = arith.extui %25 : i1 to i32
    %c0_i32_17 = arith.constant 0 : i32
    %27 = arith.cmpi ne, %26, %c0_i32_17 : i32
    scf.if %27 {
      %c0_18 = arith.constant 0 : index
      %c0_19 = arith.constant 0 : index
      %28 = vector.load %arg4[%c0_18, %c0_19] : memref<8x1xf32, #tpu.memory_space<vmem>>, vector<8x1xf32>
      %c0_20 = arith.constant 0 : index
      %c0_21 = arith.constant 0 : index
      %29 = vector.load %arg5[%c0_20, %c0_21] : memref<8x1xf32, #tpu.memory_space<vmem>>, vector<8x1xf32>
      %30 = math.log %29 : vector<8x1xf32>
      %31 = arith.addf %28, %30 : vector<8x1xf32>
      %c0_22 = arith.constant 0 : index
      %c0_23 = arith.constant 0 : index
      %32 = vector.load %arg6[%c0_22, %c0_23] : memref<8x1xf32, #tpu.memory_space<vmem>>, vector<8x1xf32>
      %cst_24 = arith.constant 7.812500e-03 : f32
      %33 = vector.broadcast %cst_24 : f32 to vector<8x1xf32>
      %34 = arith.mulf %32, %33 : vector<8x1xf32>
      %35 = arith.subf %31, %34 : vector<8x1xf32>
      %c0_25 = arith.constant 0 : index
      %c0_26 = arith.constant 0 : index
      %36 = vector.load %arg3[%c0_25, %c0_26] : memref<8x1xf32, #tpu.memory_space<vmem>>, vector<8x1xf32>
      tpu.vector_store %arg3[%c0_25, %c0_26], %35 {strides = array<i32>} : memref<8x1xf32, #tpu.memory_space<vmem>>, vector<8x1xf32>,
    } else {
    }
    return
  }
  func.func @transform_0(%arg0: i32, %arg1: i32) -> (i32, i32) {
    %c0_i32 = arith.constant 0 : i32
    return %arg0, %arg1 : i32, i32
  }
  func.func @transform_1(%arg0: i32, %arg1: i32) -> (i32, i32) {
    %c0_i32 = arith.constant 0 : i32
    %c0_i32_0 = arith.constant 0 : i32
    return %arg0, %c0_i32 : i32, i32
  }
}

</mosaic_0001>

<llo_original>
// kernel: tpu_custom_call.1
$region0: #{tpu_custom_call.1}
  #allocation0 [shape = 'u32[]', space=smem, size = 0x4, offset = 0x4, fixed_abs, tag = 'smem constant byte address 0x4 - core index']
  #allocation1 [shape = 'u32[72,128]{1,0:T(1,128)}', space=vmem, size = 0x9000, scoped, tag = 'internal scratch']
  #allocation2 [shape = 'f32[8,1]{1,0:T(8,128)}', space=vmem, size = 0x1000, scoped, tag = 'scratch operand']
  #allocation3 [shape = 'f32[8,1]{1,0:T(8,128)}', space=vmem, size = 0x1000, scoped, tag = 'scratch operand']
  #allocation4 [shape = 'f32[8,1]{1,0:T(8,128)}', space=vmem, size = 0x1000, scoped, tag = 'scratch operand']
  %s0 = inlined_call_operand.hbm [shape: f32[16,128], index: 0, kind: input, shape index: {}]
  %s1 = inlined_call_operand.vmem [shape: f32[16,1], index: 1, kind: output, shape index: {}]
  %s2 = sld [smem:[#allocation0]]
  $region49: #{tpu_custom_call.1} parent=0
    _
  %s4 = ssub.s32 1, %s2
  %s5 = scalar_select 0, %s4, %s2
  $region1: #{tpu_custom_call.1} parent=0
    #allocation5 [shape = 'u8[8192]{0}', space=vmem, size = 0x2000, scoped, tag = 'input window, operand 0']
    #allocation6 [shape = 's32[2]{0}', space=sflag, size = 0x8, scoped, tag = 'scoped memory for tpu_custom_call.1']
    %6 = vsyncpa [#allocation6], 0
    %s7 = scalar_lea.sflag [#allocation6], 1
    %8 = vsyncpa %s7, 0
    loop: start=0, step=1, limit=4
    $region2: #{tpu_custom_call.1} parent=1 // loop_pre_header
      _
    $region3: #{tpu_custom_call.1} parent=1 // loop_header
      %s10 = sphi 0, %s14
      %p11 = scmp.ge.s32.totalorder %s10, 4
      %s17 = sphi 0, %s29
      %s18 = sphi 0, %s25
      %s19 = sphi 0, %s17
      %s20 = sphi 0, %s18
      %s21 = sphi 0, %s19
      %s22 = sphi 0, %s20
      %s34 = sphi 0, %s36
      %s37 = sphi 0, %s34
      %s38 = sphi 0, %s37
      %s54 = sphi 0, %s38
      %s60 = sphi 0, %s62
      %s63 = sphi 0, %s60
      %s64 = sphi 0, %s63
      %s80 = sphi 0, %s64
    $region4: #{tpu_custom_call.1} parent=1 // loop_header_branch
      %13 = sbr.rel (%p11) target = $region8
    $region5: #{tpu_custom_call.1} parent=1 // loop_body
      %s15 = ssub.s32 %s10, 1
      %s16 = ssub.s32 %s10, 2
      %s23 = sadd.s32 1, %s18
      %p24 = scmp.ge.s32.totalorder %s23, 1
      %s25 = scalar_select %p24, 0, %s23
      %s26 = sadd.s32 1, %s17
      %s27 = scalar_select %p24, %s26, %s17
      %p28 = scmp.ge.s32.totalorder %s27, 2
      %s29 = scalar_select %p28, 0, %s27
      %s30 = ssub.s32 %s17, %s29
      %s31 = ssub.s32 %s18, %s25
      %s32 = sor.u32 %s30, %s31
      %p33 = scmp.eq.s32.totalorder %s32, 0
      %s35 = sadd.s32 %s34, 1
      %s36 = scalar_select %p33, %s34, %s35
      %p39 = pneg %p33
      %p40 = scmp.eq.s32.totalorder %s10, 1
      %p41 = por %p39, %p40
      %p42 = scmp.ne.s32.totalorder %s34, %s37
      %p43 = scmp.eq.s32.totalorder %s10, 0
      %p44 = por %p42, %p43
      %p45 = scmp.ne.s32.totalorder %s34, %s37
      %p46 = scmp.eq.s32.totalorder %s15, 1
      %p47 = por %p45, %p46
      %p48 = scmp.ne.s32.totalorder %s37, %s38
      %p49 = scmp.eq.s32.totalorder %s15, 0
      %p50 = por %p48, %p49
      %p51 = scmp.ne.s32.totalorder %s37, %s38
      %p52 = scmp.eq.s32.totalorder %s16, 1
      %p53 = por %p51, %p52
      %p55 = scmp.ne.s32.totalorder %s38, %s54
      %p56 = scmp.eq.s32.totalorder %s16, 0
      %p57 = por %p55, %p56
      %s58 = ssub.s32 %s17, %s29
      %p59 = scmp.eq.s32.totalorder %s58, 0
      %s61 = sadd.s32 %s60, 1
      %s62 = scalar_select %p59, %s60, %s61
      %p65 = pneg %p59
      %p66 = scmp.eq.s32.totalorder %s10, 1
      %p67 = por %p65, %p66
      %p68 = scmp.ne.s32.totalorder %s60, %s63
      %p69 = scmp.eq.s32.totalorder %s10, 0
      %p70 = por %p68, %p69
      %p71 = scmp.ne.s32.totalorder %s60, %s63
      %p72 = scmp.eq.s32.totalorder %s15, 1
      %p73 = por %p71, %p72
      %p74 = scmp.ne.s32.totalorder %s63, %s64
      %p75 = scmp.eq.s32.totalorder %s15, 0
      %p76 = por %p74, %p75
      %p77 = scmp.ne.s32.totalorder %s63, %s64
      %p78 = scmp.eq.s32.totalorder %s16, 1
      %p79 = por %p77, %p78
      %p81 = scmp.ne.s32.totalorder %s64, %s80
      %p82 = scmp.eq.s32.totalorder %s16, 0
      %p83 = por %p81, %p82
      %p84 = scmp.le.s32.totalorder 1, %s10
      %p85 = scmp.lt.s32.totalorder %s10, 3
      %p86 = pnand %p84, %p85
      %p87 = pneg %p86
      // Predicated region
      $region9: #{tpu_custom_call.1} parent=5 // pred_check
        _
      $region10: #{tpu_custom_call.1} parent=5 // pred_check_branch
        %89 = sbr.rel (%p86) target = $region12
      $region11: #{tpu_custom_call.1} parent=5 // pred_region
        %s90 = ssub.s32 %s10, 1
      $region12: #{tpu_custom_call.1} parent=5 // pred_fallthru
        _
      %p91 = scmp.lt.s32.totalorder %s10, 2
      // Predicated region
      $region13: #{tpu_custom_call.1} parent=5 // pred_check
        %p92 = pneg %p91
      $region14: #{tpu_custom_call.1} parent=5 // pred_check_branch
        %94 = sbr.rel (%p92) target = $region16
      $region15: #{tpu_custom_call.1} parent=5 // pred_region
        // Predicated region
        $region17: #{tpu_custom_call.1} parent=15 // pred_check
          %p95 = pneg %p44
        $region18: #{tpu_custom_call.1} parent=15 // pred_check_branch
          %97 = sbr.rel (%p95) target = $region20
        $region19: #{tpu_custom_call.1} parent=15 // pred_region
          %s98 = sand.u32 %s34, 1
          %s99 = scalar_lea.sflag [#allocation6], %s98
          %s100 = sand.u32 %s34, 1
          %s101 = smul.addr %s100, 8
          %s102 = scalar_lea.vmem [#allocation5], %s101
          %104 = vsyncadd %s99, 0
          %s105 = sadd.s32 %s18, %s17
          %s106 = smul.addr %s105, 8
          %s107 = scalar_lea.hbm %s0, %s106
          %s109 = sshll.u32 %s107, 4
          %s110 = int_to_ptr.hbm [resolvable:$true] %s109
          %s111 = sshll.u32 %s102, 4
          %s112 = int_to_ptr.vmem [resolvable:$true] %s111
          %114 = dma.hbm_to_vmem [thread:$0]  %s110, 128, %s112, %s99
        $region20: #{tpu_custom_call.1} parent=15 // pred_fallthru
          _
      $region16: #{tpu_custom_call.1} parent=5 // pred_fallthru
        _
      %p115 = scmp.le.s32.totalorder 1, %s10
      %p116 = scmp.lt.s32.totalorder %s10, 3
      %p117 = pnand %p115, %p116
      %p118 = pneg %p117
      // Predicated region
      $region21: #{tpu_custom_call.1} parent=5 // pred_check
        _
      $region22: #{tpu_custom_call.1} parent=5 // pred_check_branch
        %120 = sbr.rel (%p117) target = $region24
      $region23: #{tpu_custom_call.1} parent=5 // pred_region
        %s121 = ssub.s32 %s10, 1
        %s122 = sand.u32 %s37, 1
        %s123 = scalar_lea.sflag [#allocation6], %s122
        %s124 = sand.u32 %s37, 1
        %s125 = smul.addr %s124, 8
        %s126 = scalar_lea.vmem [#allocation5], %s125
        // Predicated region
        $region25: #{tpu_custom_call.1} parent=23 // pred_check
          %p127 = pneg %p50
        $region26: #{tpu_custom_call.1} parent=23 // pred_check_branch
          %129 = sbr.rel (%p127) target = $region28
        $region27: #{tpu_custom_call.1} parent=23 // pred_region
          %131 = dma.done %s123, 128
        $region28: #{tpu_custom_call.1} parent=23 // pred_fallthru
          _
        %s132 = sand.u32 %s37, 1
        %s133 = scalar_lea.sflag [#allocation6], %s132
        %s134 = sand.u32 %s37, 1
        %s135 = smul.addr %s134, 8
        %s136 = scalar_lea.vmem [#allocation5], %s135
        %p137 = pneg %p50
        %p138 = pneg %p47
        %p139 = pneg %p76
        %p140 = pneg %p73
        %p141 = scmp.lt.s32.totalorder %s19, 1
        %s142 = scalar_select %p141, %s19, 1
        %s143 = smul.addr %s142, 8
        %s144 = scalar_lea.vmem %s1, %s143
        %p145 = scmp.lt.s32.totalorder %s19, 1
        %s146 = scalar_select %p145, %s19, 1
        %s147 = smul.addr %s146, 8
        %s148 = scalar_lea.vmem %s1, %s147
        %p149 = scmp.eq.s32.totalorder %s20, 0
        // Predicated region
        $region29: #{tpu_custom_call.1} parent=23 // pred_check
          %p150 = pneg %p149
        $region30: #{tpu_custom_call.1} parent=23 // pred_check_branch
          %152 = sbr.rel (%p150) target = $region32
        $region31: #{tpu_custom_call.1} parent=23 // pred_region
          %vm153 = vcmask 7168
          %154 = vst.msk [vmem:[#allocation2] sm:$0xff] %vm153, -inf
          %155 = vst.msk [vmem:[#allocation3] sm:$0xff] %vm153, 0.0
          %156 = vst.msk [vmem:[#allocation4] sm:$0xff] %vm153, 0.0
        $region32: #{tpu_custom_call.1} parent=23 // pred_fallthru
          _
        %v157 = vld [vmem:[%s126] sm:$0xff]
        %v158 = vld [vmem:[#allocation2] sm:$0xff]
        %159 = vmax.xlane.f32.xlu0 %v157
        %v160 = vpop.xlane.xlu0 %159
        %v161 = vmax.f32 %v158, %v160
        %v162 = vsub.f32 %v158, %v161
        %v163 = vmul.f32 %v162, 1.442695
        %v164 = vpow.pop %v163
        %v165 = vld [vmem:[#allocation3] sm:$0xff]
        %v166 = vmul.f32 %v164, %v165
        %168 = vset.pattern.permute.xlu0 0
        %169 = vperm.xlu0 %168, %v161
        %v170 = vpop.permute.xlu0 %169
        %v172 = vsub.f32 %v157, %v170
        %v173 = vmul.f32 %v172, 1.442695
        %v174 = vpow.pop %v173
        %175 = vadd.xlane.f32.xlu0 %v174
        %v176 = vpop.xlane.xlu0 %175
        %v177 = vadd.f32 %v166, %v176
        %vm178 = vcmask 7168
        %179 = vst.msk [vmem:[#allocation3] sm:$0xff] %vm178, %v177
        %v180 = vld [vmem:[#allocation4] sm:$0xff]
        %181 = vadd.xlane.f32.xlu0 %v157
        %v182 = vpop.xlane.xlu0 %181
        %v183 = vadd.f32 %v180, %v182
        %184 = vst.msk [vmem:[#allocation4] sm:$0xff] %vm178, %v183
        %185 = vst.msk [vmem:[#allocation2] sm:$0xff] %vm178, %v161
        // Predicated region
        $region33: #{tpu_custom_call.1} parent=23 // pred_check
          %p186 = pneg %p149
        $region34: #{tpu_custom_call.1} parent=23 // pred_check_branch
          %188 = sbr.rel (%p186) target = $region36
        $region35: #{tpu_custom_call.1} parent=23 // pred_region
          %v189 = vld [vmem:[#allocation2] sm:$0xff]
          %v190 = vld [vmem:[#allocation3] sm:$0xff]
          %v191 = vlog2.pop %v190
          %v192 = vmul.f32 %v191, 0.6931472
          %v193 = vadd.f32 %v189, %v192
          %v194 = vld [vmem:[#allocation4] sm:$0xff]
          %v195 = vmul.f32 %v194, 0.0078125
          %v196 = vsub.f32 %v193, %v195
          %197 = vst.msk [vmem:[%s148] sm:$0xff] %vm178, %v196
        $region36: #{tpu_custom_call.1} parent=23 // pred_fallthru
          _
        %p198 = scmp.lt.s32.totalorder %s19, 1
        %s199 = scalar_select %p198, %s19, 1
        %s200 = smul.addr %s199, 8
        %s201 = scalar_lea.vmem %s1, %s200
        // Predicated region
        $region37: #{tpu_custom_call.1} parent=23 // pred_check
          %p202 = pneg %p73
        $region38: #{tpu_custom_call.1} parent=23 // pred_check_branch
          %204 = sbr.rel (%p202) target = $region40
        $region39: #{tpu_custom_call.1} parent=23 // pred_region
          _
        $region40: #{tpu_custom_call.1} parent=23 // pred_fallthru
          _
      $region24: #{tpu_custom_call.1} parent=5 // pred_fallthru
        _
      %p205 = scmp.le.s32.totalorder 2, %s10
      // Predicated region
      $region41: #{tpu_custom_call.1} parent=5 // pred_check
        %p206 = pneg %p205
      $region42: #{tpu_custom_call.1} parent=5 // pred_check_branch
        %208 = sbr.rel (%p206) target = $region44
      $region43: #{tpu_custom_call.1} parent=5 // pred_region
        %s209 = ssub.s32 %s10, 2
        // Predicated region
        $region45: #{tpu_custom_call.1} parent=43 // pred_check
          %p210 = pneg %p79
        $region46: #{tpu_custom_call.1} parent=43 // pred_check_branch
          %212 = sbr.rel (%p210) target = $region48
        $region47: #{tpu_custom_call.1} parent=43 // pred_region
          %p213 = scmp.lt.s32.totalorder %s21, 1
          %s214 = scalar_select %p213, %s21, 1
          %s215 = smul.addr %s214, 8
          %s216 = scalar_lea.vmem %s1, %s215
        $region48: #{tpu_custom_call.1} parent=43 // pred_fallthru
          _
      $region44: #{tpu_custom_call.1} parent=5 // pred_fallthru
        _
    $region6: #{tpu_custom_call.1} parent=1 // loop_footer
      %s14 = sadd.s32 1, %s10
    $region7: #{tpu_custom_call.1} parent=1 // loop_footer_branch
      %9 = sbr.rel target = $region3
    $region8: #{tpu_custom_call.1} parent=1 // loop_exit
      _
    %217 = vsyncpa [#allocation6], 1
    %s218 = scalar_lea.sflag [#allocation6], 1
    %219 = vsyncpa %s218, 1

</llo_original>
